<compile_context>
chip_gen: v7x
topology: tpu7x:2x2x1
jax: 0.10.0
libtpu: 0.0.40
codegen_flags: <defaults>
</compile_context>

<pallas_src>
import jax
import jax.numpy as jnp
from jax import lax
from jax.experimental import pallas as pl
from jax.experimental.pallas import tpu as pltpu


def crf_loss_kernel(emit_ref, mask_ref, tgt_ref, ends_ref,
                    trans_ref, strans_ref, etrans_ref, loss_ref):
    T, B, N = emit_ref.shape

    emit = emit_ref[...]            # (T, B, N) f32   -- single load, reused
    mask = mask_ref[...]            # (T, B)    f32 {0,1}
    ends = ends_ref[...]            # (T, B)    f32 one-hot of last valid step
    trans = trans_ref[...]          # (N, N)
    strans = strans_ref[...]        # (1, N)
    etrans = etrans_ref[...]        # (1, N)

    # Build the gold-tag one-hot in-kernel from the int32 targets
    # (iota along the lane dim, compare, cast) -- cheaper than shipping a
    # float one-hot from HBM.
    tag_iota = lax.broadcasted_iota(jnp.int32, (T, B, N), 2)
    tgt = (tag_iota == tgt_ref[...][:, :, None]).astype(jnp.float32)   # (T,B,N)

    # ---------------- logZ: forward recursion as log-matmul-exp (MXU) --------
    exp_trans = jnp.exp(trans)                                  # hoisted, (N, N)
    alpha = strans + emit[0]                                    # (B, N)
    # T is small and static: full unroll of the serial dependence chain.
    for i in range(1, T):
        amax = jnp.max(alpha, axis=1, keepdims=True)            # (B, 1)
        probs = jnp.exp(alpha - amax)                           # (B, N)
        s = jnp.dot(probs, exp_trans,
                    preferred_element_type=jnp.float32)         # (B, N) on MXU
        new = emit[i] + amax + jnp.log(s)                       # (B, N)
        keep = mask[i][:, None] > 0.5                           # (B, 1)
        alpha = jnp.where(keep, new, alpha)

    final = alpha + etrans                                      # (B, N)
    fmax = jnp.max(final, axis=1, keepdims=True)                # (B, 1)
    logZ = jnp.sum(
        jnp.log(jnp.sum(jnp.exp(final - fmax), axis=1, keepdims=True)) + fmax)

    # ---------------- gold-path score -----------------------------------------
    # Emission score at gold tags (masked) and end-transition score fused into
    # a single (T, B, N) weighted reduction against the gold one-hot.
    gold_w = emit * mask[:, :, None] + etrans[None, :, :] * ends[:, :, None]
    emit_end_score = jnp.sum(tgt * gold_w)

    # transition score trans[target[t-1], target[t]] via one-hot bilinear form,
    # masked with mask[1:] (no concatenate, no (T, B) temporary)
    prev = tgt[:-1].reshape(((T - 1) * B, N))
    curr = (tgt[1:] * mask[1:, :, None]).reshape(((T - 1) * B, N))
    trans_score = jnp.sum(
        jnp.dot(prev, trans, preferred_element_type=jnp.float32) * curr)

    # start transitions: strans[target[0, b]] summed over b (tiny (B, N) reduce)
    start_score = jnp.sum(tgt[0] * strans)

    score = emit_end_score + trans_score + start_score
    loss = (logZ - score) / jnp.float32(B)
    loss_ref[...] = jnp.reshape(loss, (1, 1))


def crf_forward(emit, target, mask_bool, trans, strans, etrans):
    """Pallas-backed CRF NLL.

    emit: (T,B,N) f32, target: (T,B) int, mask: (T,B) bool.
    Precondition (same as the PyTorch module): masks are contiguous prefixes
    and every sequence has length >= 1 (mask[0] all True); an all-False column
    would silently drop its end transition.
    """
    T, B, N = emit.shape
    mask_f = mask_bool.astype(jnp.float32)
    lens = jnp.sum(mask_bool.astype(jnp.int32), axis=0)                 # (B,)
    ends_oh = jax.nn.one_hot(lens - 1, T, dtype=jnp.float32).T          # (T, B)
    strans2d = strans.reshape(1, N)
    etrans2d = etrans.reshape(1, N)

    bytes_in = 4 * (emit.size + mask_f.size + target.size + ends_oh.size
                    + trans.size + 2 * N)
    cost = pl.CostEstimate(
        flops=int(4 * T * B * N * N + 12 * T * B * N),
        transcendentals=int(T * B * N + N * N + B * N + T * B),
        bytes_accessed=int(bytes_in + 4),
    )

    vmem = pl.BlockSpec(memory_space=pltpu.MemorySpace.VMEM)
    out = pl.pallas_call(
        crf_loss_kernel,
        out_shape=jax.ShapeDtypeStruct((1, 1), jnp.float32),
        in_specs=[vmem] * 7,
        out_specs=vmem,
        cost_estimate=cost,
    )(emit, mask_f, target.astype(jnp.int32), ends_oh,
      trans, strans2d, etrans2d)
    return out[0, 0]


def crf_forward_ref(emit, target, mask_bool, trans, strans, etrans):
    """Pure-JAX reference mirroring the PyTorch module semantics."""
    T, B, N = emit.shape
    alpha = strans + emit[0]
    for i in range(1, T):
        scores = trans[None] + emit[i][:, None, :] + alpha[:, :, None]
        lse = jax.scipy.special.logsumexp(scores, axis=1)
        alpha = jnp.where(mask_bool[i][:, None], lse, alpha)
    logZ = jnp.sum(jax.scipy.special.logsumexp(alpha + etrans, axis=1))

    sc = jnp.zeros((T, B), jnp.float32)
    sc = sc.at[1:].add(trans[target[:-1], target[1:]])
    sc = sc + jnp.take_along_axis(emit, target[:, :, None], axis=2)[..., 0]
    score = jnp.sum(jnp.where(mask_bool, sc, 0.0))
    ends = jnp.sum(mask_bool.astype(jnp.int32), axis=0) - 1
    score = score + jnp.sum(strans[target[0]])
    score = score + jnp.sum(etrans[target[ends, jnp.arange(B)]])
    return (logZ - score) / B


if __name__ == "__main__":
    T, B, N = 8, 4, 8  # seq len, batch, num tags (nt)

    key = jax.random.PRNGKey(0)
    k_trans, k_strans, k_etrans, k_emit, k_tgt = jax.random.split(key, 5)

    # deterministic parameter init matching nn.Parameter(randn(...) / nt**0.5)
    trans = jax.random.normal(k_trans, (N, N), jnp.float32) / (N ** 0.5)
    strans = jax.random.normal(k_strans, (N,), jnp.float32) / (N ** 0.5)
    etrans = jax.random.normal(k_etrans, (N,), jnp.float32) / (N ** 0.5)

    emit = jax.random.normal(k_emit, (T, B, N), jnp.float32)
    target = jax.random.randint(k_tgt, (T, B), 0, N, jnp.int32)

    # contiguous-prefix masks with varying lengths (all >= 1)
    lens = jnp.array([8, 6, 5, 3], jnp.int32)
    mask_bool = (jnp.arange(T)[:, None] < lens[None, :])

    loss = jax.block_until_ready(
        crf_forward(emit, target, mask_bool, trans, strans, etrans))
    loss_ref = crf_forward_ref(emit, target, mask_bool, trans, strans, etrans)

    assert jnp.allclose(loss, loss_ref, rtol=1e-4, atol=1e-4), (loss, loss_ref)
    print("KERNEL_OK")
</pallas_src>

<mosaic_0001>
module attributes {stable_mosaic.version = 11 : i64} {
  func.func @crf_loss_kernel(%arg0: memref<8x4x8xf32, #tpu.memory_space<vmem>>, %arg1: memref<8x4xf32, #tpu.memory_space<vmem>>, %arg2: memref<8x4xi32, #tpu.memory_space<vmem>>, %arg3: memref<8x4xf32, #tpu.memory_space<vmem>>, %arg4: memref<8x8xf32, #tpu.memory_space<vmem>>, %arg5: memref<1x8xf32, #tpu.memory_space<vmem>>, %arg6: memref<1x8xf32, #tpu.memory_space<vmem>>, %arg7: memref<1x1xf32, #tpu.memory_space<vmem>>) attributes {dimension_semantics = [], scalar_prefetch = 0 : i64, scratch_operands = 0 : i64, tpu.core_type = #tpu.core_type<tc>} {
    %c0 = arith.constant 0 : index
    %c0_0 = arith.constant 0 : index
    %c0_1 = arith.constant 0 : index
    %0 = vector.load %arg0[%c0, %c0_0, %c0_1] : memref<8x4x8xf32, #tpu.memory_space<vmem>>, vector<8x4x8xf32>
    %c0_2 = arith.constant 0 : index
    %c0_3 = arith.constant 0 : index
    %1 = vector.load %arg1[%c0_2, %c0_3] : memref<8x4xf32, #tpu.memory_space<vmem>>, vector<8x4xf32>
    %c0_4 = arith.constant 0 : index
    %c0_5 = arith.constant 0 : index
    %2 = vector.load %arg3[%c0_4, %c0_5] : memref<8x4xf32, #tpu.memory_space<vmem>>, vector<8x4xf32>
    %c0_6 = arith.constant 0 : index
    %c0_7 = arith.constant 0 : index
    %3 = vector.load %arg4[%c0_6, %c0_7] : memref<8x8xf32, #tpu.memory_space<vmem>>, vector<8x8xf32>
    %c0_8 = arith.constant 0 : index
    %c0_9 = arith.constant 0 : index
    %4 = vector.load %arg5[%c0_8, %c0_9] : memref<1x8xf32, #tpu.memory_space<vmem>>, vector<1x8xf32>
    %c0_10 = arith.constant 0 : index
    %c0_11 = arith.constant 0 : index
    %5 = vector.load %arg6[%c0_10, %c0_11] : memref<1x8xf32, #tpu.memory_space<vmem>>, vector<1x8xf32>
    %6 = tpu.iota {dimensions = array<i32: 2>} : vector<8x4x8xi32>
    %c0_12 = arith.constant 0 : index
    %c0_13 = arith.constant 0 : index
    %7 = vector.load %arg2[%c0_12, %c0_13] : memref<8x4xi32, #tpu.memory_space<vmem>>, vector<8x4xi32>
    %8 = vector.shape_cast %7 : vector<8x4xi32> to vector<8x4x1xi32>
    %9 = vector.broadcast %8 : vector<8x4x1xi32> to vector<8x4x8xi32>
    %10 = arith.cmpi eq, %6, %9 : vector<8x4x8xi32>
    %11 = arith.extui %10 : vector<8x4x8xi1> to vector<8x4x8xi32>
    %12 = arith.sitofp %11 : vector<8x4x8xi32> to vector<8x4x8xf32>
    %13 = math.exp %3 : vector<8x8xf32>
    %14 = vector.extract_strided_slice %0 {offsets = [0, 0, 0], sizes = [1, 4, 8], strides = [1, 1, 1]} : vector<8x4x8xf32> to vector<1x4x8xf32>
    %15 = vector.shape_cast %14 : vector<1x4x8xf32> to vector<4x8xf32>
    %16 = vector.broadcast %4 : vector<1x8xf32> to vector<4x8xf32>
    %17 = arith.addf %16, %15 : vector<4x8xf32>
    %cst = arith.constant dense<0xFF800000> : vector<4xf32>
    %18 = vector.multi_reduction <maximumf>, %17, %cst [1] : vector<4x8xf32> to vector<4xf32>
    %19 = vector.shape_cast %18 : vector<4xf32> to vector<4x1xf32>
    %20 = vector.broadcast %19 : vector<4x1xf32> to vector<4x8xf32>
    %21 = arith.subf %17, %20 : vector<4x8xf32>
    %22 = math.exp %21 : vector<4x8xf32>
    %cst_14 = arith.constant dense<0.000000e+00> : vector<4x8xf32>
    %23 = tpu.matmul %22, %13, %cst_14 {dimension_numbers = #tpu.dot_dimension_numbers<[1], [0], [0], [1], [0, 0, 1, 1], [], []>} : vector<4x8xf32>, vector<8x8xf32>, vector<4x8xf32> -> vector<4x8xf32>
    %24 = vector.extract_strided_slice %0 {offsets = [1, 0, 0], sizes = [1, 4, 8], strides = [1, 1, 1]} : vector<8x4x8xf32> to vector<1x4x8xf32>
    %25 = vector.shape_cast %24 : vector<1x4x8xf32> to vector<4x8xf32>
    %26 = vector.broadcast %19 : vector<4x1xf32> to vector<4x8xf32>
    %27 = arith.addf %25, %26 : vector<4x8xf32>
    %28 = math.log %23 : vector<4x8xf32>
    %29 = arith.addf %27, %28 : vector<4x8xf32>
    %30 = vector.extract_strided_slice %1 {offsets = [1, 0], sizes = [1, 4], strides = [1, 1]} : vector<8x4xf32> to vector<1x4xf32>
    %31 = vector.shape_cast %30 : vector<1x4xf32> to vector<4xf32>
    %32 = vector.shape_cast %31 : vector<4xf32> to vector<4x1xf32>
    %cst_15 = arith.constant 5.000000e-01 : f32
    %33 = vector.broadcast %cst_15 : f32 to vector<4x1xf32>
    %34 = arith.cmpf ogt, %32, %33 : vector<4x1xf32>
    %35 = vector.shape_cast %34 : vector<4x1xi1> to vector<4x1xi1>
    %36 = vector.broadcast %35 : vector<4x1xi1> to vector<4x8xi1>
    %37 = arith.select %36, %29, %17 : vector<4x8xi1>, vector<4x8xf32>
    %cst_16 = arith.constant dense<0xFF800000> : vector<4xf32>
    %38 = vector.multi_reduction <maximumf>, %37, %cst_16 [1] : vector<4x8xf32> to vector<4xf32>
    %39 = vector.shape_cast %38 : vector<4xf32> to vector<4x1xf32>
    %40 = vector.broadcast %39 : vector<4x1xf32> to vector<4x8xf32>
    %41 = arith.subf %37, %40 : vector<4x8xf32>
    %42 = math.exp %41 : vector<4x8xf32>
    %cst_17 = arith.constant dense<0.000000e+00> : vector<4x8xf32>
    %43 = tpu.matmul %42, %13, %cst_17 {dimension_numbers = #tpu.dot_dimension_numbers<[1], [0], [0], [1], [0, 0, 1, 1], [], []>} : vector<4x8xf32>, vector<8x8xf32>, vector<4x8xf32> -> vector<4x8xf32>
    %44 = vector.extract_strided_slice %0 {offsets = [2, 0, 0], sizes = [1, 4, 8], strides = [1, 1, 1]} : vector<8x4x8xf32> to vector<1x4x8xf32>
    %45 = vector.shape_cast %44 : vector<1x4x8xf32> to vector<4x8xf32>
    %46 = vector.broadcast %39 : vector<4x1xf32> to vector<4x8xf32>
    %47 = arith.addf %45, %46 : vector<4x8xf32>
    %48 = math.log %43 : vector<4x8xf32>
    %49 = arith.addf %47, %48 : vector<4x8xf32>
    %50 = vector.extract_strided_slice %1 {offsets = [2, 0], sizes = [1, 4], strides = [1, 1]} : vector<8x4xf32> to vector<1x4xf32>
    %51 = vector.shape_cast %50 : vector<1x4xf32> to vector<4xf32>
    %52 = vector.shape_cast %51 : vector<4xf32> to vector<4x1xf32>
    %cst_18 = arith.constant 5.000000e-01 : f32
    %53 = vector.broadcast %cst_18 : f32 to vector<4x1xf32>
    %54 = arith.cmpf ogt, %52, %53 : vector<4x1xf32>
    %55 = vector.shape_cast %54 : vector<4x1xi1> to vector<4x1xi1>
    %56 = vector.broadcast %55 : vector<4x1xi1> to vector<4x8xi1>
    %57 = arith.select %56, %49, %37 : vector<4x8xi1>, vector<4x8xf32>
    %cst_19 = arith.constant dense<0xFF800000> : vector<4xf32>
    %58 = vector.multi_reduction <maximumf>, %57, %cst_19 [1] : vector<4x8xf32> to vector<4xf32>
    %59 = vector.shape_cast %58 : vector<4xf32> to vector<4x1xf32>
    %60 = vector.broadcast %59 : vector<4x1xf32> to vector<4x8xf32>
    %61 = arith.subf %57, %60 : vector<4x8xf32>
    %62 = math.exp %61 : vector<4x8xf32>
    %cst_20 = arith.constant dense<0.000000e+00> : vector<4x8xf32>
    %63 = tpu.matmul %62, %13, %cst_20 {dimension_numbers = #tpu.dot_dimension_numbers<[1], [0], [0], [1], [0, 0, 1, 1], [], []>} : vector<4x8xf32>, vector<8x8xf32>, vector<4x8xf32> -> vector<4x8xf32>
    %64 = vector.extract_strided_slice %0 {offsets = [3, 0, 0], sizes = [1, 4, 8], strides = [1, 1, 1]} : vector<8x4x8xf32> to vector<1x4x8xf32>
    %65 = vector.shape_cast %64 : vector<1x4x8xf32> to vector<4x8xf32>
    %66 = vector.broadcast %59 : vector<4x1xf32> to vector<4x8xf32>
    %67 = arith.addf %65, %66 : vector<4x8xf32>
    %68 = math.log %63 : vector<4x8xf32>
    %69 = arith.addf %67, %68 : vector<4x8xf32>
    %70 = vector.extract_strided_slice %1 {offsets = [3, 0], sizes = [1, 4], strides = [1, 1]} : vector<8x4xf32> to vector<1x4xf32>
    %71 = vector.shape_cast %70 : vector<1x4xf32> to vector<4xf32>
    %72 = vector.shape_cast %71 : vector<4xf32> to vector<4x1xf32>
    %cst_21 = arith.constant 5.000000e-01 : f32
    %73 = vector.broadcast %cst_21 : f32 to vector<4x1xf32>
    %74 = arith.cmpf ogt, %72, %73 : vector<4x1xf32>
    %75 = vector.shape_cast %74 : vector<4x1xi1> to vector<4x1xi1>
    %76 = vector.broadcast %75 : vector<4x1xi1> to vector<4x8xi1>
    %77 = arith.select %76, %69, %57 : vector<4x8xi1>, vector<4x8xf32>
    %cst_22 = arith.constant dense<0xFF800000> : vector<4xf32>
    %78 = vector.multi_reduction <maximumf>, %77, %cst_22 [1] : vector<4x8xf32> to vector<4xf32>
    %79 = vector.shape_cast %78 : vector<4xf32> to vector<4x1xf32>
    %80 = vector.broadcast %79 : vector<4x1xf32> to vector<4x8xf32>
    %81 = arith.subf %77, %80 : vector<4x8xf32>
    %82 = math.exp %81 : vector<4x8xf32>
    %cst_23 = arith.constant dense<0.000000e+00> : vector<4x8xf32>
    %83 = tpu.matmul %82, %13, %cst_23 {dimension_numbers = #tpu.dot_dimension_numbers<[1], [0], [0], [1], [0, 0, 1, 1], [], []>} : vector<4x8xf32>, vector<8x8xf32>, vector<4x8xf32> -> vector<4x8xf32>
    %84 = vector.extract_strided_slice %0 {offsets = [4, 0, 0], sizes = [1, 4, 8], strides = [1, 1, 1]} : vector<8x4x8xf32> to vector<1x4x8xf32>
    %85 = vector.shape_cast %84 : vector<1x4x8xf32> to vector<4x8xf32>
    %86 = vector.broadcast %79 : vector<4x1xf32> to vector<4x8xf32>
    %87 = arith.addf %85, %86 : vector<4x8xf32>
    %88 = math.log %83 : vector<4x8xf32>
    %89 = arith.addf %87, %88 : vector<4x8xf32>
    %90 = vector.extract_strided_slice %1 {offsets = [4, 0], sizes = [1, 4], strides = [1, 1]} : vector<8x4xf32> to vector<1x4xf32>
    %91 = vector.shape_cast %90 : vector<1x4xf32> to vector<4xf32>
    %92 = vector.shape_cast %91 : vector<4xf32> to vector<4x1xf32>
    %cst_24 = arith.constant 5.000000e-01 : f32
    %93 = vector.broadcast %cst_24 : f32 to vector<4x1xf32>
    %94 = arith.cmpf ogt, %92, %93 : vector<4x1xf32>
    %95 = vector.shape_cast %94 : vector<4x1xi1> to vector<4x1xi1>
    %96 = vector.broadcast %95 : vector<4x1xi1> to vector<4x8xi1>
    %97 = arith.select %96, %89, %77 : vector<4x8xi1>, vector<4x8xf32>
    %cst_25 = arith.constant dense<0xFF800000> : vector<4xf32>
    %98 = vector.multi_reduction <maximumf>, %97, %cst_25 [1] : vector<4x8xf32> to vector<4xf32>
    %99 = vector.shape_cast %98 : vector<4xf32> to vector<4x1xf32>
    %100 = vector.broadcast %99 : vector<4x1xf32> to vector<4x8xf32>
    %101 = arith.subf %97, %100 : vector<4x8xf32>
    %102 = math.exp %101 : vector<4x8xf32>
    %cst_26 = arith.constant dense<0.000000e+00> : vector<4x8xf32>
    %103 = tpu.matmul %102, %13, %cst_26 {dimension_numbers = #tpu.dot_dimension_numbers<[1], [0], [0], [1], [0, 0, 1, 1], [], []>} : vector<4x8xf32>, vector<8x8xf32>, vector<4x8xf32> -> vector<4x8xf32>
    %104 = vector.extract_strided_slice %0 {offsets = [5, 0, 0], sizes = [1, 4, 8], strides = [1, 1, 1]} : vector<8x4x8xf32> to vector<1x4x8xf32>
    %105 = vector.shape_cast %104 : vector<1x4x8xf32> to vector<4x8xf32>
    %106 = vector.broadcast %99 : vector<4x1xf32> to vector<4x8xf32>
    %107 = arith.addf %105, %106 : vector<4x8xf32>
    %108 = math.log %103 : vector<4x8xf32>
    %109 = arith.addf %107, %108 : vector<4x8xf32>
    %110 = vector.extract_strided_slice %1 {offsets = [5, 0], sizes = [1, 4], strides = [1, 1]} : vector<8x4xf32> to vector<1x4xf32>
    %111 = vector.shape_cast %110 : vector<1x4xf32> to vector<4xf32>
    %112 = vector.shape_cast %111 : vector<4xf32> to vector<4x1xf32>
    %cst_27 = arith.constant 5.000000e-01 : f32
    %113 = vector.broadcast %cst_27 : f32 to vector<4x1xf32>
    %114 = arith.cmpf ogt, %112, %113 : vector<4x1xf32>
    %115 = vector.shape_cast %114 : vector<4x1xi1> to vector<4x1xi1>
    %116 = vector.broadcast %115 : vector<4x1xi1> to vector<4x8xi1>
    %117 = arith.select %116, %109, %97 : vector<4x8xi1>, vector<4x8xf32>
    %cst_28 = arith.constant dense<0xFF800000> : vector<4xf32>
    %118 = vector.multi_reduction <maximumf>, %117, %cst_28 [1] : vector<4x8xf32> to vector<4xf32>
    %119 = vector.shape_cast %118 : vector<4xf32> to vector<4x1xf32>
    %120 = vector.broadcast %119 : vector<4x1xf32> to vector<4x8xf32>
    %121 = arith.subf %117, %120 : vector<4x8xf32>
    %122 = math.exp %121 : vector<4x8xf32>
    %cst_29 = arith.constant dense<0.000000e+00> : vector<4x8xf32>
    %123 = tpu.matmul %122, %13, %cst_29 {dimension_numbers = #tpu.dot_dimension_numbers<[1], [0], [0], [1], [0, 0, 1, 1], [], []>} : vector<4x8xf32>, vector<8x8xf32>, vector<4x8xf32> -> vector<4x8xf32>
    %124 = vector.extract_strided_slice %0 {offsets = [6, 0, 0], sizes = [1, 4, 8], strides = [1, 1, 1]} : vector<8x4x8xf32> to vector<1x4x8xf32>
    %125 = vector.shape_cast %124 : vector<1x4x8xf32> to vector<4x8xf32>
    %126 = vector.broadcast %119 : vector<4x1xf32> to vector<4x8xf32>
    %127 = arith.addf %125, %126 : vector<4x8xf32>
    %128 = math.log %123 : vector<4x8xf32>
    %129 = arith.addf %127, %128 : vector<4x8xf32>
    %130 = vector.extract_strided_slice %1 {offsets = [6, 0], sizes = [1, 4], strides = [1, 1]} : vector<8x4xf32> to vector<1x4xf32>
    %131 = vector.shape_cast %130 : vector<1x4xf32> to vector<4xf32>
    %132 = vector.shape_cast %131 : vector<4xf32> to vector<4x1xf32>
    %cst_30 = arith.constant 5.000000e-01 : f32
    %133 = vector.broadcast %cst_30 : f32 to vector<4x1xf32>
    %134 = arith.cmpf ogt, %132, %133 : vector<4x1xf32>
    %135 = vector.shape_cast %134 : vector<4x1xi1> to vector<4x1xi1>
    %136 = vector.broadcast %135 : vector<4x1xi1> to vector<4x8xi1>
    %137 = arith.select %136, %129, %117 : vector<4x8xi1>, vector<4x8xf32>
    %cst_31 = arith.constant dense<0xFF800000> : vector<4xf32>
    %138 = vector.multi_reduction <maximumf>, %137, %cst_31 [1] : vector<4x8xf32> to vector<4xf32>
    %139 = vector.shape_cast %138 : vector<4xf32> to vector<4x1xf32>
    %140 = vector.broadcast %139 : vector<4x1xf32> to vector<4x8xf32>
    %141 = arith.subf %137, %140 : vector<4x8xf32>
    %142 = math.exp %141 : vector<4x8xf32>
    %cst_32 = arith.constant dense<0.000000e+00> : vector<4x8xf32>
    %143 = tpu.matmul %142, %13, %cst_32 {dimension_numbers = #tpu.dot_dimension_numbers<[1], [0], [0], [1], [0, 0, 1, 1], [], []>} : vector<4x8xf32>, vector<8x8xf32>, vector<4x8xf32> -> vector<4x8xf32>
    %144 = vector.extract_strided_slice %0 {offsets = [7, 0, 0], sizes = [1, 4, 8], strides = [1, 1, 1]} : vector<8x4x8xf32> to vector<1x4x8xf32>
    %145 = vector.shape_cast %144 : vector<1x4x8xf32> to vector<4x8xf32>
    %146 = vector.broadcast %139 : vector<4x1xf32> to vector<4x8xf32>
    %147 = arith.addf %145, %146 : vector<4x8xf32>
    %148 = math.log %143 : vector<4x8xf32>
    %149 = arith.addf %147, %148 : vector<4x8xf32>
    %150 = vector.extract_strided_slice %1 {offsets = [7, 0], sizes = [1, 4], strides = [1, 1]} : vector<8x4xf32> to vector<1x4xf32>
    %151 = vector.shape_cast %150 : vector<1x4xf32> to vector<4xf32>
    %152 = vector.shape_cast %151 : vector<4xf32> to vector<4x1xf32>
    %cst_33 = arith.constant 5.000000e-01 : f32
    %153 = vector.broadcast %cst_33 : f32 to vector<4x1xf32>
    %154 = arith.cmpf ogt, %152, %153 : vector<4x1xf32>
    %155 = vector.shape_cast %154 : vector<4x1xi1> to vector<4x1xi1>
    %156 = vector.broadcast %155 : vector<4x1xi1> to vector<4x8xi1>
    %157 = arith.select %156, %149, %137 : vector<4x8xi1>, vector<4x8xf32>
    %158 = vector.broadcast %5 : vector<1x8xf32> to vector<4x8xf32>
    %159 = arith.addf %157, %158 : vector<4x8xf32>
    %cst_34 = arith.constant dense<0xFF800000> : vector<4xf32>
    %160 = vector.multi_reduction <maximumf>, %159, %cst_34 [1] : vector<4x8xf32> to vector<4xf32>
    %161 = vector.shape_cast %160 : vector<4xf32> to vector<4x1xf32>
    %162 = vector.broadcast %161 : vector<4x1xf32> to vector<4x8xf32>
    %163 = arith.subf %159, %162 : vector<4x8xf32>
    %164 = math.exp %163 : vector<4x8xf32>
    %cst_35 = arith.constant dense<0.000000e+00> : vector<4xf32>
    %165 = vector.multi_reduction <add>, %164, %cst_35 [1] : vector<4x8xf32> to vector<4xf32>
    %166 = vector.shape_cast %165 : vector<4xf32> to vector<4x1xf32>
    %167 = math.log %166 : vector<4x1xf32>
    %168 = arith.addf %167, %161 : vector<4x1xf32>
    %169 = vector.shape_cast %168 : vector<4x1xf32> to vector<1x4x1xf32>
    %cst_36 = arith.constant dense<0.000000e+00> : vector<1xf32>
    %170 = vector.multi_reduction <add>, %169, %cst_36 [1, 2] : vector<1x4x1xf32> to vector<1xf32>
    %171 = vector.shape_cast %170 : vector<1xf32> to vector<1x1x1xf32>
    %172 = vector.extract %171[0, 0, 0] : f32 from vector<1x1x1xf32>
    %173 = vector.shape_cast %1 : vector<8x4xf32> to vector<8x4x1xf32>
    %174 = vector.broadcast %173 : vector<8x4x1xf32> to vector<8x4x8xf32>
    %175 = arith.mulf %0, %174 : vector<8x4x8xf32>
    %176 = vector.shape_cast %5 : vector<1x8xf32> to vector<1x1x8xf32>
    %177 = vector.shape_cast %2 : vector<8x4xf32> to vector<8x4x1xf32>
    %178 = vector.broadcast %176 : vector<1x1x8xf32> to vector<8x4x8xf32>
    %179 = vector.broadcast %177 : vector<8x4x1xf32> to vector<8x4x8xf32>
    %180 = arith.mulf %178, %179 : vector<8x4x8xf32>
    %181 = arith.addf %175, %180 : vector<8x4x8xf32>
    %182 = arith.mulf %12, %181 : vector<8x4x8xf32>
    %183 = vector.shape_cast %182 : vector<8x4x8xf32> to vector<1x8x4x8xf32>
    %cst_37 = arith.constant dense<0.000000e+00> : vector<1xf32>
    %184 = vector.multi_reduction <add>, %183, %cst_37 [1, 2, 3] : vector<1x8x4x8xf32> to vector<1xf32>
    %185 = vector.shape_cast %184 : vector<1xf32> to vector<1x1x1x1xf32>
    %186 = vector.extract %185[0, 0, 0, 0] : f32 from vector<1x1x1x1xf32>
    %187 = vector.extract_strided_slice %12 {offsets = [0, 0, 0], sizes = [7, 4, 8], strides = [1, 1, 1]} : vector<8x4x8xf32> to vector<7x4x8xf32>
    %188 = vector.shape_cast %187 : vector<7x4x8xf32> to vector<28x8xf32>
    %189 = vector.extract_strided_slice %12 {offsets = [1, 0, 0], sizes = [7, 4, 8], strides = [1, 1, 1]} : vector<8x4x8xf32> to vector<7x4x8xf32>
    %190 = vector.extract_strided_slice %1 {offsets = [1, 0], sizes = [7, 4], strides = [1, 1]} : vector<8x4xf32> to vector<7x4xf32>
    %191 = vector.shape_cast %190 : vector<7x4xf32> to vector<7x4x1xf32>
    %192 = vector.broadcast %191 : vector<7x4x1xf32> to vector<7x4x8xf32>
    %193 = arith.mulf %189, %192 : vector<7x4x8xf32>
    %194 = vector.shape_cast %193 : vector<7x4x8xf32> to vector<28x8xf32>
    %cst_38 = arith.constant dense<0.000000e+00> : vector<28x8xf32>
    %195 = tpu.matmul %188, %3, %cst_38 {dimension_numbers = #tpu.dot_dimension_numbers<[1], [0], [0], [1], [0, 0, 1, 1], [], []>} : vector<28x8xf32>, vector<8x8xf32>, vector<28x8xf32> -> vector<28x8xf32>
    %196 = arith.mulf %195, %194 : vector<28x8xf32>
    %197 = vector.shape_cast %196 : vector<28x8xf32> to vector<1x28x8xf32>
    %cst_39 = arith.constant dense<0.000000e+00> : vector<1xf32>
    %198 = vector.multi_reduction <add>, %197, %cst_39 [1, 2] : vector<1x28x8xf32> to vector<1xf32>
    %199 = vector.shape_cast %198 : vector<1xf32> to vector<1x1x1xf32>
    %200 = vector.extract %199[0, 0, 0] : f32 from vector<1x1x1xf32>
    %201 = vector.extract_strided_slice %12 {offsets = [0, 0, 0], sizes = [1, 4, 8], strides = [1, 1, 1]} : vector<8x4x8xf32> to vector<1x4x8xf32>
    %202 = vector.shape_cast %201 : vector<1x4x8xf32> to vector<4x8xf32>
    %203 = vector.broadcast %4 : vector<1x8xf32> to vector<4x8xf32>
    %204 = arith.mulf %202, %203 : vector<4x8xf32>
    %205 = vector.shape_cast %204 : vector<4x8xf32> to vector<1x4x8xf32>
    %cst_40 = arith.constant dense<0.000000e+00> : vector<1xf32>
    %206 = vector.multi_reduction <add>, %205, %cst_40 [1, 2] : vector<1x4x8xf32> to vector<1xf32>
    %207 = vector.shape_cast %206 : vector<1xf32> to vector<1x1x1xf32>
    %208 = vector.extract %207[0, 0, 0] : f32 from vector<1x1x1xf32>
    %209 = arith.addf %186, %200 : f32
    %210 = arith.addf %209, %208 : f32
    %211 = arith.subf %172, %210 : f32
    %cst_41 = arith.constant 4.000000e+00 : f32
    %212 = arith.divf %211, %cst_41 : f32
    %213 = vector.broadcast %212 : f32 to vector<1x1xf32>
    %c0_42 = arith.constant 0 : index
    %c0_43 = arith.constant 0 : index
    %214 = vector.load %arg7[%c0_42, %c0_43] : memref<1x1xf32, #tpu.memory_space<vmem>>, vector<1x1xf32>
    tpu.vector_store %arg7[%c0_42, %c0_43], %213 {strides = array<i32>} : memref<1x1xf32, #tpu.memory_space<vmem>>, vector<1x1xf32>,
    return
  }
}

</mosaic_0001>

<llo_original>
// kernel: tpu_custom_call.1
$region0: #{tpu_custom_call.1}
  #allocation0 [shape = 'u32[]', space=smem, size = 0x4, offset = 0x4, fixed_abs, tag = 'smem constant byte address 0x4 - core index']
  #allocation1 [shape = 'u32[144,128]{1,0:T(1,128)}', space=vmem, size = 0x12000, scoped, tag = 'internal scratch']
  %s0 = inlined_call_operand.vmem [shape: f32[8,4,8], index: 0, kind: input, shape index: {}]
  %s1 = inlined_call_operand.vmem [shape: f32[8,4], index: 1, kind: input, shape index: {}]
  %s2 = inlined_call_operand.vmem [shape: s32[8,4], index: 2, kind: input, shape index: {}]
  %s3 = inlined_call_operand.vmem [shape: f32[8,4], index: 3, kind: input, shape index: {}]
  %s4 = inlined_call_operand.vmem [shape: f32[8,8], index: 4, kind: input, shape index: {}]
  %s5 = inlined_call_operand.vmem [shape: f32[1,8], index: 5, kind: input, shape index: {}]
  %s6 = inlined_call_operand.vmem [shape: f32[1,8], index: 6, kind: input, shape index: {}]
  %s7 = inlined_call_operand.hbm [shape: f32[1,1], index: 7, kind: output, shape index: {}]
  %s8 = sld [smem:[#allocation0]]
  $region38: #{tpu_custom_call.1} parent=0
    _
  %s10 = ssub.s32 1, %s8
  %s11 = scalar_select 0, %s10, %s8
  $region1: #{tpu_custom_call.1} parent=0
    #allocation2 [shape = 'u8[512]{0}', space=vmem, size = 0x400, scoped, tag = 'output window, operand 0, single buffered']
    #allocation3 [shape = 's32[1]{0}', space=sflag, size = 0x4, scoped, tag = 'scoped memory for tpu_custom_call.1']
    %12 = vsyncpa [#allocation3], 0
    // Predicated region
    $region2: #{tpu_custom_call.1} parent=1 // pred_check
      _
    $region3: #{tpu_custom_call.1} parent=1 // pred_check_branch
      %14 = sbr.rel (0) target = $region5
    $region4: #{tpu_custom_call.1} parent=1 // pred_region
      _
    $region5: #{tpu_custom_call.1} parent=1 // pred_fallthru
      _
    // Predicated region
    $region6: #{tpu_custom_call.1} parent=1 // pred_check
      _
    $region7: #{tpu_custom_call.1} parent=1 // pred_check_branch
      %16 = sbr.rel (0) target = $region9
    $region8: #{tpu_custom_call.1} parent=1 // pred_region
      _
    $region9: #{tpu_custom_call.1} parent=1 // pred_fallthru
      _
    // Predicated region
    $region10: #{tpu_custom_call.1} parent=1 // pred_check
      _
    $region11: #{tpu_custom_call.1} parent=1 // pred_check_branch
      %18 = sbr.rel (0) target = $region13
    $region12: #{tpu_custom_call.1} parent=1 // pred_region
      _
    $region13: #{tpu_custom_call.1} parent=1 // pred_fallthru
      _
    // Predicated region
    $region14: #{tpu_custom_call.1} parent=1 // pred_check
      _
    $region15: #{tpu_custom_call.1} parent=1 // pred_check_branch
      %20 = sbr.rel (0) target = $region17
    $region16: #{tpu_custom_call.1} parent=1 // pred_region
      _
    $region17: #{tpu_custom_call.1} parent=1 // pred_fallthru
      _
    // Predicated region
    $region18: #{tpu_custom_call.1} parent=1 // pred_check
      _
    $region19: #{tpu_custom_call.1} parent=1 // pred_check_branch
      %22 = sbr.rel (0) target = $region21
    $region20: #{tpu_custom_call.1} parent=1 // pred_region
      _
    $region21: #{tpu_custom_call.1} parent=1 // pred_fallthru
      _
    // Predicated region
    $region22: #{tpu_custom_call.1} parent=1 // pred_check
      _
    $region23: #{tpu_custom_call.1} parent=1 // pred_check_branch
      %24 = sbr.rel (0) target = $region25
    $region24: #{tpu_custom_call.1} parent=1 // pred_region
      _
    $region25: #{tpu_custom_call.1} parent=1 // pred_fallthru
      _
    // Predicated region
    $region26: #{tpu_custom_call.1} parent=1 // pred_check
      _
    $region27: #{tpu_custom_call.1} parent=1 // pred_check_branch
      %26 = sbr.rel (0) target = $region29
    $region28: #{tpu_custom_call.1} parent=1 // pred_region
      _
    $region29: #{tpu_custom_call.1} parent=1 // pred_fallthru
      _
    %v27 = vld [vmem:[%s0] sm:$0xf]
    %v28 = vld [vmem:[%s0 + $0x4] sm:$0xf]
    %v29 = vld [vmem:[%s0 + $0x8] sm:$0xf]
    %v30 = vld [vmem:[%s0 + $0xc] sm:$0xf]
    %v31 = vld [vmem:[%s0 + $0x10] sm:$0xf]
    %v32 = vld [vmem:[%s0 + $0x14] sm:$0xf]
    %v33 = vld [vmem:[%s0 + $0x18] sm:$0xf]
    %v34 = vld [vmem:[%s0 + $0x1c] sm:$0xf]
    %v35 = vld [vmem:[%s1] sm:$0xff]
    %v36 = vld [vmem:[%s3] sm:$0xff]
    %v37 = vld [vmem:[%s4] sm:$0xff]
    %v38 = vld [vmem:[%s5] sm:$0x1]
    %v39 = vld [vmem:[%s6] sm:$0x1]
    %v40 = vlaneseq
    %v41 = vand.u32 %v40, 127
    %v42 = vld [vmem:[%s2] sm:$0xff]
    %v43 = vlaneseq
    %v44 = vshrl.u32 %v43, 7
    %v45 = vsub.s32 0, %v44
    %v46 = vrot.slane %v42, %v45
    %48 = vbcast.lane.b32.xlu0 %v46, 256
    %v49 = vpop.permute.xlu0 %48
    %v50 = vlaneseq
    %v51 = vshrl.u32 %v50, 7
    %v52 = vsub.s32 1, %v51
    %v53 = vrot.slane %v42, %v52
    %55 = vbcast.lane.b32.xlu0 %v53, 256
    %v56 = vpop.permute.xlu0 %55
    %v57 = vlaneseq
    %v58 = vshrl.u32 %v57, 7
    %v59 = vsub.s32 2, %v58
    %v60 = vrot.slane %v42, %v59
    %62 = vbcast.lane.b32.xlu0 %v60, 256
    %v63 = vpop.permute.xlu0 %62
    %v64 = vlaneseq
    %v65 = vshrl.u32 %v64, 7
    %v66 = vsub.s32 3, %v65
    %v67 = vrot.slane %v42, %v66
    %69 = vbcast.lane.b32.xlu0 %v67, 256
    %v70 = vpop.permute.xlu0 %69
    %v71 = vlaneseq
    %v72 = vshrl.u32 %v71, 7
    %v73 = vsub.s32 4, %v72
    %v74 = vrot.slane %v42, %v73
    %76 = vbcast.lane.b32.xlu0 %v74, 256
    %v77 = vpop.permute.xlu0 %76
    %v78 = vlaneseq
    %v79 = vshrl.u32 %v78, 7
    %v80 = vsub.s32 5, %v79
    %v81 = vrot.slane %v42, %v80
    %83 = vbcast.lane.b32.xlu0 %v81, 256
    %v84 = vpop.permute.xlu0 %83
    %v85 = vlaneseq
    %v86 = vshrl.u32 %v85, 7
    %v87 = vsub.s32 6, %v86
    %v88 = vrot.slane %v42, %v87
    %90 = vbcast.lane.b32.xlu0 %v88, 256
    %v91 = vpop.permute.xlu0 %90
    %v92 = vlaneseq
    %v93 = vshrl.u32 %v92, 7
    %v94 = vsub.s32 7, %v93
    %v95 = vrot.slane %v42, %v94
    %97 = vbcast.lane.b32.xlu0 %v95, 256
    %v98 = vpop.permute.xlu0 %97
    %vm99 = vcmp.eq.s32.totalorder %v41, %v49
    %vm100 = vcmp.eq.s32.totalorder %v41, %v56
    %vm101 = vcmp.eq.s32.totalorder %v41, %v63
    %vm102 = vcmp.eq.s32.totalorder %v41, %v70
    %vm103 = vcmp.eq.s32.totalorder %v41, %v77
    %vm104 = vcmp.eq.s32.totalorder %v41, %v84
    %vm105 = vcmp.eq.s32.totalorder %v41, %v91
    %vm106 = vcmp.eq.s32.totalorder %v41, %v98
    %v107 = vsel %vm99, 1, 0
    %v108 = vsel %vm100, 1, 0
    %v109 = vsel %vm101, 1, 0
    %v110 = vsel %vm102, 1, 0
    %v111 = vsel %vm103, 1, 0
    %v112 = vsel %vm104, 1, 0
    %v113 = vsel %vm105, 1, 0
    %v114 = vsel %vm106, 1, 0
    %v115 = vcvt.s32.f32 %v107
    %v116 = vcvt.s32.f32 %v108
    %v117 = vcvt.s32.f32 %v109
    %v118 = vcvt.s32.f32 %v110
    %v119 = vcvt.s32.f32 %v111
    %v120 = vcvt.s32.f32 %v112
    %v121 = vcvt.s32.f32 %v113
    %v122 = vcvt.s32.f32 %v114
    %v123 = vmul.f32 %v37, 1.442695
    %v124 = vpow.pop %v123
    %v126 = vlaneseq
    %v127 = vshrl.u32 %v126, 7
    %v128 = vsub.s32 0, %v127
    %v129 = vrot.slane %v38, %v128
    %v131 = vadd.f32 %v129, %v27
    %vm132 = vcmask 60416
    %v133 = vsel %vm132, %v131, -inf
    %134 = vmax.xlane.f32.xlu0 %v133
    %v135 = vpop.xlane.xlu0 %134
    %v136 = vsub.f32 %v131, %v135
    %v137 = vmul.f32 %v136, 1.442695
    %v138 = vpow.pop %v137
    %vm139 = vcmask 64512
    %v141 = vsel %vm139, %v138, 0
    %143 = vmatprep.subr.mxu0 0.0
    %144 = vmatpush1.msra.mxu0 %v124
    %145 = vmatprep.subr.mxu0 0.0
    %146 = vmatpush1.msra.mxu0 0.0
    %147 = vmatprep.subr.mxu0 0.0
    %148 = vmatpush1.msra.mxu0 0.0
    %149 = vmatprep.subr.mxu0 0.0
    %150 = vmatpush1.msra.mxu0 0.0
    %151 = vmatprep.subr.mxu0 0.0
    %152 = vmatpush1.msra.mxu0 0.0
    %153 = vmatprep.subr.mxu0 0.0
    %154 = vmatpush1.msra.mxu0 0.0
    %155 = vmatprep.subr.mxu0 0.0
    %156 = vmatpush1.msra.mxu0 0.0
    %157 = vmatprep.subr.mxu0 0.0
    %158 = vmatpush1.msra.mxu0 0.0
    %159 = vmatprep.subr.mxu0 0.0
    %160 = vmatpush1.msra.mxu0 0.0
    %161 = vmatprep.subr.mxu0 0.0
    %162 = vmatpush1.msra.mxu0 0.0
    %163 = vmatprep.subr.mxu0 0.0
    %164 = vmatpush1.msra.mxu0 0.0
    %165 = vmatprep.subr.mxu0 0.0
    %166 = vmatpush1.msra.mxu0 0.0
    %167 = vmatprep.subr.mxu0 0.0
    %168 = vmatpush1.msra.mxu0 0.0
    %169 = vmatprep.subr.mxu0 0.0
    %170 = vmatpush1.msra.mxu0 0.0
    %171 = vmatprep.subr.mxu0 0.0
    %172 = vmatpush1.msra.mxu0 0.0
    %173 = vmatprep.subr.mxu0 0.0
    %174 = vmatpush1.msra.mxu0 0.0
    %175 = vmatprep.subr.mxu0 0.0
    %176 = vmatpush1.msra.mxu0 0.0
    %177 = vmatprep.subr.mxu0 0.0
    %178 = vmatpush1.msra.mxu0 0.0
    %179 = vmatprep.subr.mxu0 0.0
    %180 = vmatpush1.msra.mxu0 0.0
    %181 = vmatprep.subr.mxu0 0.0
    %182 = vmatpush1.msra.mxu0 0.0
    %183 = vmatprep.subr.mxu0 0.0
    %184 = vmatpush1.msra.mxu0 0.0
    %185 = vmatprep.subr.mxu0 0.0
    %186 = vmatpush1.msra.mxu0 0.0
    %187 = vmatprep.subr.mxu0 0.0
    %188 = vmatpush1.msra.mxu0 0.0
    %189 = vmatprep.subr.mxu0 0.0
    %190 = vmatpush1.msra.mxu0 0.0
    %191 = vmatprep.subr.mxu0 0.0
    %192 = vmatpush1.msra.mxu0 0.0
    %193 = vmatprep.subr.mxu0 0.0
    %194 = vmatpush1.msra.mxu0 0.0
    %195 = vmatprep.subr.mxu0 0.0
    %196 = vmatpush1.msra.mxu0 0.0
    %197 = vmatprep.subr.mxu0 0.0
    %198 = vmatpush1.msra.mxu0 0.0
    %199 = vmatprep.subr.mxu0 0.0
    %200 = vmatpush1.msra.mxu0 0.0
    %201 = vmatprep.subr.mxu0 0.0
    %202 = vmatpush1.msra.mxu0 0.0
    %203 = vmatprep.subr.mxu0 0.0
    %204 = vmatpush1.msra.mxu0 0.0
    %205 = vmatprep.subr.mxu0 0.0
    %206 = vmatpush1.msra.mxu0 0.0
    %207 = vmatprep.mubr.f32.mxu0 0.0
    %208 = vmatmul.mubr.f32.gmra.mrb[0].mxu0 %v141
    %v209 = vpop.f32.mrb[0].mxu0
    %v210 = vadd.f32 0.0, %v209
    %v211 = vpop.f32.mrb[0].mxu0
    %212 = vdwg.mxu0
    %v213 = vadd.f32 %v28, %v135
    %v214 = vlog2.pop %v210
    %v215 = vmul.f32 %v214, 0.6931472
    %v216 = vadd.f32 %v213, %v215
    %v217 = vlaneseq
    %v218 = vshrl.u32 %v217, 7
    %v219 = vsub.s32 1, %v218
    %v220 = vrot.slane %v35, %v219
    %222 = vbcast.lane.b32.xlu0 %v220, 256
    %v223 = vpop.permute.xlu0 %222
    %vm224 = vcmp.gt.f32.partialorder %v223, 0.5
    %v225 = vsel %vm224, 1, 0
    %vm226 = vcmp.eq.s32.totalorder %v225, 1
    %v227 = vsel %vm226, %v216, %v131
    %v228 = vsel %vm132, %v227, -inf
    %229 = vmax.xlane.f32.xlu0 %v228
    %v230 = vpop.xlane.xlu0 %229
    %v231 = vsub.f32 %v227, %v230
    %v232 = vmul.f32 %v231, 1.442695
    %v233 = vpow.pop %v232
    %v235 = vsel %vm139, %v233, 0
    %237 = vmatprep.subr.mxu0 0.0
    %238 = vmatpush1.msra.mxu0 %v124
    %239 = vmatprep.subr.mxu0 0.0
    %240 = vmatpush1.msra.mxu0 0.0
    %241 = vmatprep.subr.mxu0 0.0
    %242 = vmatpush1.msra.mxu0 0.0
    %243 = vmatprep.subr.mxu0 0.0
    %244 = vmatpush1.msra.mxu0 0.0
    %245 = vmatprep.subr.mxu0 0.0
    %246 = vmatpush1.msra.mxu0 0.0
    %247 = vmatprep.subr.mxu0 0.0
    %248 = vmatpush1.msra.mxu0 0.0
    %249 = vmatprep.subr.mxu0 0.0
    %250 = vmatpush1.msra.mxu0 0.0
    %251 = vmatprep.subr.mxu0 0.0
    %252 = vmatpush1.msra.mxu0 0.0
    %253 = vmatprep.subr.mxu0 0.0
    %254 = vmatpush1.msra.mxu0 0.0
    %255 = vmatprep.subr.mxu0 0.0
    %256 = vmatpush1.msra.mxu0 0.0
    %257 = vmatprep.subr.mxu0 0.0
    %258 = vmatpush1.msra.mxu0 0.0
    %259 = vmatprep.subr.mxu0 0.0
    %260 = vmatpush1.msra.mxu0 0.0
    %261 = vmatprep.subr.mxu0 0.0
    %262 = vmatpush1.msra.mxu0 0.0
    %263 = vmatprep.subr.mxu0 0.0
    %264 = vmatpush1.msra.mxu0 0.0
    %265 = vmatprep.subr.mxu0 0.0
    %266 = vmatpush1.msra.mxu0 0.0
    %267 = vmatprep.subr.mxu0 0.0
    %268 = vmatpush1.msra.mxu0 0.0
    %269 = vmatprep.subr.mxu0 0.0
    %270 = vmatpush1.msra.mxu0 0.0
    %271 = vmatprep.subr.mxu0 0.0
    %272 = vmatpush1.msra.mxu0 0.0
    %273 = vmatprep.subr.mxu0 0.0
    %274 = vmatpush1.msra.mxu0 0.0
    %275 = vmatprep.subr.mxu0 0.0
    %276 = vmatpush1.msra.mxu0 0.0
    %277 = vmatprep.subr.mxu0 0.0
    %278 = vmatpush1.msra.mxu0 0.0
    %279 = vmatprep.subr.mxu0 0.0
    %280 = vmatpush1.msra.mxu0 0.0
    %281 = vmatprep.subr.mxu0 0.0
    %282 = vmatpush1.msra.mxu0 0.0
    %283 = vmatprep.subr.mxu0 0.0
    %284 = vmatpush1.msra.mxu0 0.0
    %285 = vmatprep.subr.mxu0 0.0
    %286 = vmatpush1.msra.mxu0 0.0
    %287 = vmatprep.subr.mxu0 0.0
    %288 = vmatpush1.msra.mxu0 0.0
    %289 = vmatprep.subr.mxu0 0.0
    %290 = vmatpush1.msra.mxu0 0.0
    %291 = vmatprep.subr.mxu0 0.0
    %292 = vmatpush1.msra.mxu0 0.0
    %293 = vmatprep.subr.mxu0 0.0
    %294 = vmatpush1.msra.mxu0 0.0
    %295 = vmatprep.subr.mxu0 0.0
    %296 = vmatpush1.msra.mxu0 0.0
    %297 = vmatprep.subr.mxu0 0.0
    %298 = vmatpush1.msra.mxu0 0.0
    %299 = vmatprep.subr.mxu0 0.0
    %300 = vmatpush1.msra.mxu0 0.0
    %301 = vmatprep.mubr.f32.mxu0 0.0
    %302 = vmatmul.mubr.f32.gmra.mrb[0].mxu0 %v235
    %v303 = vpop.f32.mrb[0].mxu0
    %v304 = vadd.f32 0.0, %v303
    %v305 = vpop.f32.mrb[0].mxu0
    %306 = vdwg.mxu0
    %v307 = vadd.f32 %v29, %v230
    %v308 = vlog2.pop %v304
    %v309 = vmul.f32 %v308, 0.6931472
    %v310 = vadd.f32 %v307, %v309
    %v311 = vlaneseq
    %v312 = vshrl.u32 %v311, 7
    %v313 = vsub.s32 2, %v312
    %v314 = vrot.slane %v35, %v313
    %316 = vbcast.lane.b32.xlu0 %v314, 256
    %v317 = vpop.permute.xlu0 %316
    %vm318 = vcmp.gt.f32.partialorder %v317, 0.5
    %v319 = vsel %vm318, 1, 0
    %vm320 = vcmp.eq.s32.totalorder %v319, 1
    %v321 = vsel %vm320, %v310, %v227
    %v322 = vsel %vm132, %v321, -inf
    %323 = vmax.xlane.f32.xlu0 %v322
    %v324 = vpop.xlane.xlu0 %323
    %v325 = vsub.f32 %v321, %v324
    %v326 = vmul.f32 %v325, 1.442695
    %v327 = vpow.pop %v326
    %v329 = vsel %vm139, %v327, 0
    %331 = vmatprep.subr.mxu0 0.0
    %332 = vmatpush1.msra.mxu0 %v124
    %333 = vmatprep.subr.mxu0 0.0
    %334 = vmatpush1.msra.mxu0 0.0
    %335 = vmatprep.subr.mxu0 0.0
    %336 = vmatpush1.msra.mxu0 0.0
    %337 = vmatprep.subr.mxu0 0.0
    %338 = vmatpush1.msra.mxu0 0.0
    %339 = vmatprep.subr.mxu0 0.0
    %340 = vmatpush1.msra.mxu0 0.0
    %341 = vmatprep.subr.mxu0 0.0
    %342 = vmatpush1.msra.mxu0 0.0
    %343 = vmatprep.subr.mxu0 0.0
    %344 = vmatpush1.msra.mxu0 0.0
    %345 = vmatprep.subr.mxu0 0.0
    %346 = vmatpush1.msra.mxu0 0.0
    %347 = vmatprep.subr.mxu0 0.0
    %348 = vmatpush1.msra.mxu0 0.0
    %349 = vmatprep.subr.mxu0 0.0
    %350 = vmatpush1.msra.mxu0 0.0
    %351 = vmatprep.subr.mxu0 0.0
    %352 = vmatpush1.msra.mxu0 0.0
    %353 = vmatprep.subr.mxu0 0.0
    %354 = vmatpush1.msra.mxu0 0.0
    %355 = vmatprep.subr.mxu0 0.0
    %356 = vmatpush1.msra.mxu0 0.0
    %357 = vmatprep.subr.mxu0 0.0
    %358 = vmatpush1.msra.mxu0 0.0
    %359 = vmatprep.subr.mxu0 0.0
    %360 = vmatpush1.msra.mxu0 0.0
    %361 = vmatprep.subr.mxu0 0.0
    %362 = vmatpush1.msra.mxu0 0.0
    %363 = vmatprep.subr.mxu0 0.0
    %364 = vmatpush1.msra.mxu0 0.0
    %365 = vmatprep.subr.mxu0 0.0
    %366 = vmatpush1.msra.mxu0 0.0
    %367 = vmatprep.subr.mxu0 0.0
    %368 = vmatpush1.msra.mxu0 0.0
    %369 = vmatprep.subr.mxu0 0.0
    %370 = vmatpush1.msra.mxu0 0.0
    %371 = vmatprep.subr.mxu0 0.0
    %372 = vmatpush1.msra.mxu0 0.0
    %373 = vmatprep.subr.mxu0 0.0
    %374 = vmatpush1.msra.mxu0 0.0
    %375 = vmatprep.subr.mxu0 0.0
    %376 = vmatpush1.msra.mxu0 0.0
    %377 = vmatprep.subr.mxu0 0.0
    %378 = vmatpush1.msra.mxu0 0.0
    %379 = vmatprep.subr.mxu0 0.0
    %380 = vmatpush1.msra.mxu0 0.0
    %381 = vmatprep.subr.mxu0 0.0
    %382 = vmatpush1.msra.mxu0 0.0
    %383 = vmatprep.subr.mxu0 0.0
    %384 = vmatpush1.msra.mxu0 0.0
    %385 = vmatprep.subr.mxu0 0.0
    %386 = vmatpush1.msra.mxu0 0.0
    %387 = vmatprep.subr.mxu0 0.0
    %388 = vmatpush1.msra.mxu0 0.0
    %389 = vmatprep.subr.mxu0 0.0
    %390 = vmatpush1.msra.mxu0 0.0
    %391 = vmatprep.subr.mxu0 0.0
    %392 = vmatpush1.msra.mxu0 0.0
    %393 = vmatprep.subr.mxu0 0.0
    %394 = vmatpush1.msra.mxu0 0.0
    %395 = vmatprep.mubr.f32.mxu0 0.0
    %396 = vmatmul.mubr.f32.gmra.mrb[0].mxu0 %v329
    %v397 = vpop.f32.mrb[0].mxu0
    %v398 = vadd.f32 0.0, %v397
    %v399 = vpop.f32.mrb[0].mxu0
    %400 = vdwg.mxu0
    %v401 = vadd.f32 %v30, %v324
    %v402 = vlog2.pop %v398
    %v403 = vmul.f32 %v402, 0.6931472
    %v404 = vadd.f32 %v401, %v403
    %v405 = vlaneseq
    %v406 = vshrl.u32 %v405, 7
    %v407 = vsub.s32 3, %v406
    %v408 = vrot.slane %v35, %v407
    %410 = vbcast.lane.b32.xlu0 %v408, 256
    %v411 = vpop.permute.xlu0 %410
    %vm412 = vcmp.gt.f32.partialorder %v411, 0.5
    %v413 = vsel %vm412, 1, 0
    %vm414 = vcmp.eq.s32.totalorder %v413, 1
    %v415 = vsel %vm414, %v404, %v321
    %v416 = vsel %vm132, %v415, -inf
    %417 = vmax.xlane.f32.xlu0 %v416
    %v418 = vpop.xlane.xlu0 %417
    %v419 = vsub.f32 %v415, %v418
    %v420 = vmul.f32 %v419, 1.442695
    %v421 = vpow.pop %v420
    %v423 = vsel %vm139, %v421, 0
    %425 = vmatprep.subr.mxu0 0.0
    %426 = vmatpush1.msra.mxu0 %v124
    %427 = vmatprep.subr.mxu0 0.0
    %428 = vmatpush1.msra.mxu0 0.0
    %429 = vmatprep.subr.mxu0 0.0
    %430 = vmatpush1.msra.mxu0 0.0
    %431 = vmatprep.subr.mxu0 0.0
    %432 = vmatpush1.msra.mxu0 0.0
    %433 = vmatprep.subr.mxu0 0.0
    %434 = vmatpush1.msra.mxu0 0.0
    %435 = vmatprep.subr.mxu0 0.0
    %436 = vmatpush1.msra.mxu0 0.0
    %437 = vmatprep.subr.mxu0 0.0
    %438 = vmatpush1.msra.mxu0 0.0
    %439 = vmatprep.subr.mxu0 0.0
    %440 = vmatpush1.msra.mxu0 0.0
    %441 = vmatprep.subr.mxu0 0.0
    %442 = vmatpush1.msra.mxu0 0.0
    %443 = vmatprep.subr.mxu0 0.0
    %444 = vmatpush1.msra.mxu0 0.0
    %445 = vmatprep.subr.mxu0 0.0
    %446 = vmatpush1.msra.mxu0 0.0
    %447 = vmatprep.subr.mxu0 0.0
    %448 = vmatpush1.msra.mxu0 0.0
    %449 = vmatprep.subr.mxu0 0.0
    %450 = vmatpush1.msra.mxu0 0.0
    %451 = vmatprep.subr.mxu0 0.0
    %452 = vmatpush1.msra.mxu0 0.0
    %453 = vmatprep.subr.mxu0 0.0
    %454 = vmatpush1.msra.mxu0 0.0
    %455 = vmatprep.subr.mxu0 0.0
    %456 = vmatpush1.msra.mxu0 0.0
    %457 = vmatprep.subr.mxu0 0.0
    %458 = vmatpush1.msra.mxu0 0.0
    %459 = vmatprep.subr.mxu0 0.0
    %460 = vmatpush1.msra.mxu0 0.0
    %461 = vmatprep.subr.mxu0 0.0
    %462 = vmatpush1.msra.mxu0 0.0
    %463 = vmatprep.subr.mxu0 0.0
    %464 = vmatpush1.msra.mxu0 0.0
    %465 = vmatprep.subr.mxu0 0.0
    %466 = vmatpush1.msra.mxu0 0.0
    %467 = vmatprep.subr.mxu0 0.0
    %468 = vmatpush1.msra.mxu0 0.0
    %469 = vmatprep.subr.mxu0 0.0
    %470 = vmatpush1.msra.mxu0 0.0
    %471 = vmatprep.subr.mxu0 0.0
    %472 = vmatpush1.msra.mxu0 0.0
    %473 = vmatprep.subr.mxu0 0.0
    %474 = vmatpush1.msra.mxu0 0.0
    %475 = vmatprep.subr.mxu0 0.0
    %476 = vmatpush1.msra.mxu0 0.0
    %477 = vmatprep.subr.mxu0 0.0
    %478 = vmatpush1.msra.mxu0 0.0
    %479 = vmatprep.subr.mxu0 0.0
    %480 = vmatpush1.msra.mxu0 0.0
    %481 = vmatprep.subr.mxu0 0.0
    %482 = vmatpush1.msra.mxu0 0.0
    %483 = vmatprep.subr.mxu0 0.0
    %484 = vmatpush1.msra.mxu0 0.0
    %485 = vmatprep.subr.mxu0 0.0
    %486 = vmatpush1.msra.mxu0 0.0
    %487 = vmatprep.subr.mxu0 0.0
    %488 = vmatpush1.msra.mxu0 0.0
    %489 = vmatprep.mubr.f32.mxu0 0.0
    %490 = vmatmul.mubr.f32.gmra.mrb[0].mxu0 %v423
    %v491 = vpop.f32.mrb[0].mxu0
    %v492 = vadd.f32 0.0, %v491
    %v493 = vpop.f32.mrb[0].mxu0
    %494 = vdwg.mxu0
    %v495 = vadd.f32 %v31, %v418
    %v496 = vlog2.pop %v492
    %v497 = vmul.f32 %v496, 0.6931472
    %v498 = vadd.f32 %v495, %v497
    %v499 = vlaneseq
    %v500 = vshrl.u32 %v499, 7
    %v501 = vsub.s32 4, %v500
    %v502 = vrot.slane %v35, %v501
    %504 = vbcast.lane.b32.xlu0 %v502, 256
    %v505 = vpop.permute.xlu0 %504
    %vm506 = vcmp.gt.f32.partialorder %v505, 0.5
    %v507 = vsel %vm506, 1, 0
    %vm508 = vcmp.eq.s32.totalorder %v507, 1
    %v509 = vsel %vm508, %v498, %v415
    %v510 = vsel %vm132, %v509, -inf
    %511 = vmax.xlane.f32.xlu0 %v510
    %v512 = vpop.xlane.xlu0 %511
    %v513 = vsub.f32 %v509, %v512
    %v514 = vmul.f32 %v513, 1.442695
    %v515 = vpow.pop %v514
    %v517 = vsel %vm139, %v515, 0
    %519 = vmatprep.subr.mxu0 0.0
    %520 = vmatpush1.msra.mxu0 %v124
    %521 = vmatprep.subr.mxu0 0.0
    %522 = vmatpush1.msra.mxu0 0.0
    %523 = vmatprep.subr.mxu0 0.0
    %524 = vmatpush1.msra.mxu0 0.0
    %525 = vmatprep.subr.mxu0 0.0
    %526 = vmatpush1.msra.mxu0 0.0
    %527 = vmatprep.subr.mxu0 0.0
    %528 = vmatpush1.msra.mxu0 0.0
    %529 = vmatprep.subr.mxu0 0.0
    %530 = vmatpush1.msra.mxu0 0.0
    %531 = vmatprep.subr.mxu0 0.0
    %532 = vmatpush1.msra.mxu0 0.0
    %533 = vmatprep.subr.mxu0 0.0
    %534 = vmatpush1.msra.mxu0 0.0
    %535 = vmatprep.subr.mxu0 0.0
    %536 = vmatpush1.msra.mxu0 0.0
    %537 = vmatprep.subr.mxu0 0.0
    %538 = vmatpush1.msra.mxu0 0.0
    %539 = vmatprep.subr.mxu0 0.0
    %540 = vmatpush1.msra.mxu0 0.0
    %541 = vmatprep.subr.mxu0 0.0
    %542 = vmatpush1.msra.mxu0 0.0
    %543 = vmatprep.subr.mxu0 0.0
    %544 = vmatpush1.msra.mxu0 0.0
    %545 = vmatprep.subr.mxu0 0.0
    %546 = vmatpush1.msra.mxu0 0.0
    %547 = vmatprep.subr.mxu0 0.0
    %548 = vmatpush1.msra.mxu0 0.0
    %549 = vmatprep.subr.mxu0 0.0
    %550 = vmatpush1.msra.mxu0 0.0
    %551 = vmatprep.subr.mxu0 0.0
    %552 = vmatpush1.msra.mxu0 0.0
    %553 = vmatprep.subr.mxu0 0.0
    %554 = vmatpush1.msra.mxu0 0.0
    %555 = vmatprep.subr.mxu0 0.0
    %556 = vmatpush1.msra.mxu0 0.0
    %557 = vmatprep.subr.mxu0 0.0
    %558 = vmatpush1.msra.mxu0 0.0
    %559 = vmatprep.subr.mxu0 0.0
    %560 = vmatpush1.msra.mxu0 0.0
    %561 = vmatprep.subr.mxu0 0.0
    %562 = vmatpush1.msra.mxu0 0.0
    %563 = vmatprep.subr.mxu0 0.0
    %564 = vmatpush1.msra.mxu0 0.0
    %565 = vmatprep.subr.mxu0 0.0
    %566 = vmatpush1.msra.mxu0 0.0
    %567 = vmatprep.subr.mxu0 0.0
    %568 = vmatpush1.msra.mxu0 0.0
    %569 = vmatprep.subr.mxu0 0.0
    %570 = vmatpush1.msra.mxu0 0.0
    %571 = vmatprep.subr.mxu0 0.0
    %572 = vmatpush1.msra.mxu0 0.0
    %573 = vmatprep.subr.mxu0 0.0
    %574 = vmatpush1.msra.mxu0 0.0
    %575 = vmatprep.subr.mxu0 0.0
    %576 = vmatpush1.msra.mxu0 0.0
    %577 = vmatprep.subr.mxu0 0.0
    %578 = vmatpush1.msra.mxu0 0.0
    %579 = vmatprep.subr.mxu0 0.0
    %580 = vmatpush1.msra.mxu0 0.0
    %581 = vmatprep.subr.mxu0 0.0
    %582 = vmatpush1.msra.mxu0 0.0
    %583 = vmatprep.mubr.f32.mxu0 0.0
    %584 = vmatmul.mubr.f32.gmra.mrb[0].mxu0 %v517
    %v585 = vpop.f32.mrb[0].mxu0
    %v586 = vadd.f32 0.0, %v585
    %v587 = vpop.f32.mrb[0].mxu0
    %588 = vdwg.mxu0
    %v589 = vadd.f32 %v32, %v512
    %v590 = vlog2.pop %v586
    %v591 = vmul.f32 %v590, 0.6931472
    %v592 = vadd.f32 %v589, %v591
    %v593 = vlaneseq
    %v594 = vshrl.u32 %v593, 7
    %v595 = vsub.s32 5, %v594
    %v596 = vrot.slane %v35, %v595
    %598 = vbcast.lane.b32.xlu0 %v596, 256
    %v599 = vpop.permute.xlu0 %598
    %vm600 = vcmp.gt.f32.partialorder %v599, 0.5
    %v601 = vsel %vm600, 1, 0
    %vm602 = vcmp.eq.s32.totalorder %v601, 1
    %v603 = vsel %vm602, %v592, %v509
    %v604 = vsel %vm132, %v603, -inf
    %605 = vmax.xlane.f32.xlu0 %v604
    %v606 = vpop.xlane.xlu0 %605
    %v607 = vsub.f32 %v603, %v606
    %v608 = vmul.f32 %v607, 1.442695
    %v609 = vpow.pop %v608
    %v611 = vsel %vm139, %v609, 0
    %613 = vmatprep.subr.mxu0 0.0
    %614 = vmatpush1.msra.mxu0 %v124
    %615 = vmatprep.subr.mxu0 0.0
    %616 = vmatpush1.msra.mxu0 0.0
    %617 = vmatprep.subr.mxu0 0.0
    %618 = vmatpush1.msra.mxu0 0.0
    %619 = vmatprep.subr.mxu0 0.0
    %620 = vmatpush1.msra.mxu0 0.0
    %621 = vmatprep.subr.mxu0 0.0
    %622 = vmatpush1.msra.mxu0 0.0
    %623 = vmatprep.subr.mxu0 0.0
    %624 = vmatpush1.msra.mxu0 0.0
    %625 = vmatprep.subr.mxu0 0.0
    %626 = vmatpush1.msra.mxu0 0.0
    %627 = vmatprep.subr.mxu0 0.0
    %628 = vmatpush1.msra.mxu0 0.0
    %629 = vmatprep.subr.mxu0 0.0
    %630 = vmatpush1.msra.mxu0 0.0
    %631 = vmatprep.subr.mxu0 0.0
    %632 = vmatpush1.msra.mxu0 0.0
    %633 = vmatprep.subr.mxu0 0.0
    %634 = vmatpush1.msra.mxu0 0.0
    %635 = vmatprep.subr.mxu0 0.0
    %636 = vmatpush1.msra.mxu0 0.0
    %637 = vmatprep.subr.mxu0 0.0
    %638 = vmatpush1.msra.mxu0 0.0
    %639 = vmatprep.subr.mxu0 0.0
    %640 = vmatpush1.msra.mxu0 0.0
    %641 = vmatprep.subr.mxu0 0.0
    %642 = vmatpush1.msra.mxu0 0.0
    %643 = vmatprep.subr.mxu0 0.0
    %644 = vmatpush1.msra.mxu0 0.0
    %645 = vmatprep.subr.mxu0 0.0
    %646 = vmatpush1.msra.mxu0 0.0
    %647 = vmatprep.subr.mxu0 0.0
    %648 = vmatpush1.msra.mxu0 0.0
    %649 = vmatprep.subr.mxu0 0.0
    %650 = vmatpush1.msra.mxu0 0.0
    %651 = vmatprep.subr.mxu0 0.0
    %652 = vmatpush1.msra.mxu0 0.0
    %653 = vmatprep.subr.mxu0 0.0
    %654 = vmatpush1.msra.mxu0 0.0
    %655 = vmatprep.subr.mxu0 0.0
    %656 = vmatpush1.msra.mxu0 0.0
    %657 = vmatprep.subr.mxu0 0.0
    %658 = vmatpush1.msra.mxu0 0.0
    %659 = vmatprep.subr.mxu0 0.0
    %660 = vmatpush1.msra.mxu0 0.0
    %661 = vmatprep.subr.mxu0 0.0
    %662 = vmatpush1.msra.mxu0 0.0
    %663 = vmatprep.subr.mxu0 0.0
    %664 = vmatpush1.msra.mxu0 0.0
    %665 = vmatprep.subr.mxu0 0.0
    %666 = vmatpush1.msra.mxu0 0.0
    %667 = vmatprep.subr.mxu0 0.0
    %668 = vmatpush1.msra.mxu0 0.0
    %669 = vmatprep.subr.mxu0 0.0
    %670 = vmatpush1.msra.mxu0 0.0
    %671 = vmatprep.subr.mxu0 0.0
    %672 = vmatpush1.msra.mxu0 0.0
    %673 = vmatprep.subr.mxu0 0.0
    %674 = vmatpush1.msra.mxu0 0.0
    %675 = vmatprep.subr.mxu0 0.0
    %676 = vmatpush1.msra.mxu0 0.0
    %677 = vmatprep.mubr.f32.mxu0 0.0
    %678 = vmatmul.mubr.f32.gmra.mrb[0].mxu0 %v611
    %v679 = vpop.f32.mrb[0].mxu0
    %v680 = vadd.f32 0.0, %v679
    %v681 = vpop.f32.mrb[0].mxu0
    %682 = vdwg.mxu0
    %v683 = vadd.f32 %v33, %v606
    %v684 = vlog2.pop %v680
    %v685 = vmul.f32 %v684, 0.6931472
    %v686 = vadd.f32 %v683, %v685
    %v687 = vlaneseq
    %v688 = vshrl.u32 %v687, 7
    %v689 = vsub.s32 6, %v688
    %v690 = vrot.slane %v35, %v689
    %692 = vbcast.lane.b32.xlu0 %v690, 256
    %v693 = vpop.permute.xlu0 %692
    %vm694 = vcmp.gt.f32.partialorder %v693, 0.5
    %v695 = vsel %vm694, 1, 0
    %vm696 = vcmp.eq.s32.totalorder %v695, 1
    %v697 = vsel %vm696, %v686, %v603
    %v698 = vsel %vm132, %v697, -inf
    %699 = vmax.xlane.f32.xlu0 %v698
    %v700 = vpop.xlane.xlu0 %699
    %v701 = vsub.f32 %v697, %v700
    %v702 = vmul.f32 %v701, 1.442695
    %v703 = vpow.pop %v702
    %v705 = vsel %vm139, %v703, 0
    %707 = vmatprep.subr.mxu0 0.0
    %708 = vmatpush1.msra.mxu0 %v124
    %709 = vmatprep.subr.mxu0 0.0
    %710 = vmatpush1.msra.mxu0 0.0
    %711 = vmatprep.subr.mxu0 0.0
    %712 = vmatpush1.msra.mxu0 0.0
    %713 = vmatprep.subr.mxu0 0.0
    %714 = vmatpush1.msra.mxu0 0.0
    %715 = vmatprep.subr.mxu0 0.0
    %716 = vmatpush1.msra.mxu0 0.0
    %717 = vmatprep.subr.mxu0 0.0
    %718 = vmatpush1.msra.mxu0 0.0
    %719 = vmatprep.subr.mxu0 0.0
    %720 = vmatpush1.msra.mxu0 0.0
    %721 = vmatprep.subr.mxu0 0.0
    %722 = vmatpush1.msra.mxu0 0.0
    %723 = vmatprep.subr.mxu0 0.0
    %724 = vmatpush1.msra.mxu0 0.0
    %725 = vmatprep.subr.mxu0 0.0
    %726 = vmatpush1.msra.mxu0 0.0
    %727 = vmatprep.subr.mxu0 0.0
    %728 = vmatpush1.msra.mxu0 0.0
    %729 = vmatprep.subr.mxu0 0.0
    %730 = vmatpush1.msra.mxu0 0.0
    %731 = vmatprep.subr.mxu0 0.0
    %732 = vmatpush1.msra.mxu0 0.0
    %733 = vmatprep.subr.mxu0 0.0
    %734 = vmatpush1.msra.mxu0 0.0
    %735 = vmatprep.subr.mxu0 0.0
    %736 = vmatpush1.msra.mxu0 0.0
    %737 = vmatprep.subr.mxu0 0.0
    %738 = vmatpush1.msra.mxu0 0.0
    %739 = vmatprep.subr.mxu0 0.0
    %740 = vmatpush1.msra.mxu0 0.0
    %741 = vmatprep.subr.mxu0 0.0
    %742 = vmatpush1.msra.mxu0 0.0
    %743 = vmatprep.subr.mxu0 0.0
    %744 = vmatpush1.msra.mxu0 0.0
    %745 = vmatprep.subr.mxu0 0.0
    %746 = vmatpush1.msra.mxu0 0.0
    %747 = vmatprep.subr.mxu0 0.0
    %748 = vmatpush1.msra.mxu0 0.0
    %749 = vmatprep.subr.mxu0 0.0
    %750 = vmatpush1.msra.mxu0 0.0
    %751 = vmatprep.subr.mxu0 0.0
    %752 = vmatpush1.msra.mxu0 0.0
    %753 = vmatprep.subr.mxu0 0.0
    %754 = vmatpush1.msra.mxu0 0.0
    %755 = vmatprep.subr.mxu0 0.0
    %756 = vmatpush1.msra.mxu0 0.0
    %757 = vmatprep.subr.mxu0 0.0
    %758 = vmatpush1.msra.mxu0 0.0
    %759 = vmatprep.subr.mxu0 0.0
    %760 = vmatpush1.msra.mxu0 0.0
    %761 = vmatprep.subr.mxu0 0.0
    %762 = vmatpush1.msra.mxu0 0.0
    %763 = vmatprep.subr.mxu0 0.0
    %764 = vmatpush1.msra.mxu0 0.0
    %765 = vmatprep.subr.mxu0 0.0
    %766 = vmatpush1.msra.mxu0 0.0
    %767 = vmatprep.subr.mxu0 0.0
    %768 = vmatpush1.msra.mxu0 0.0
    %769 = vmatprep.subr.mxu0 0.0
    %770 = vmatpush1.msra.mxu0 0.0
    %771 = vmatprep.mubr.f32.mxu0 0.0
    %772 = vmatmul.mubr.f32.gmra.mrb[0].mxu0 %v705
    %v773 = vpop.f32.mrb[0].mxu0
    %v774 = vadd.f32 0.0, %v773
    %v775 = vpop.f32.mrb[0].mxu0
    %776 = vdwg.mxu0
    %v777 = vadd.f32 %v34, %v700
    %v778 = vlog2.pop %v774
    %v779 = vmul.f32 %v778, 0.6931472
    %v780 = vadd.f32 %v777, %v779
    %v781 = vlaneseq
    %v782 = vshrl.u32 %v781, 7
    %v783 = vsub.s32 7, %v782
    %v784 = vrot.slane %v35, %v783
    %786 = vbcast.lane.b32.xlu0 %v784, 256
    %v787 = vpop.permute.xlu0 %786
    %vm788 = vcmp.gt.f32.partialorder %v787, 0.5
    %v789 = vsel %vm788, 1, 0
    %vm790 = vcmp.eq.s32.totalorder %v789, 1
    %v791 = vsel %vm790, %v780, %v697
    %v793 = vlaneseq
    %v794 = vshrl.u32 %v793, 7
    %v795 = vsub.s32 0, %v794
    %v796 = vrot.slane %v39, %v795
    %v798 = vadd.f32 %v791, %v796
    %v799 = vsel %vm132, %v798, -inf
    %800 = vmax.xlane.f32.xlu0 %v799
    %v801 = vpop.xlane.xlu0 %800
    %v802 = vsub.f32 %v798, %v801
    %v803 = vmul.f32 %v802, 1.442695
    %v804 = vpow.pop %v803
    %v805 = vsel %vm132, %v804, 0.0
    %806 = vadd.xlane.f32.xlu0 %v805
    %v807 = vpop.xlane.xlu0 %806
    %v808 = vlog2.pop %v807
    %v809 = vmul.f32 %v808, 0.6931472
    %v810 = vadd.f32 %v809, %v801
    %vm811 = vcmask 3072
    %v812 = vsel %vm811, %v810, 0.0
    %813 = vadd.xlane.f32.xlu0 %v812
    %v814 = vpop.xlane.xlu0 %813
    %v815 = vrot.slane %v814, 4
    %v816 = vadd.f32 %v814, %v815
    %v817 = vrot.slane %v816, 2
    %v818 = vadd.f32 %v816, %v817
    %v819 = vrot.slane %v818, 1
    %v820 = vadd.f32 %v818, %v819
    %s821 = vtos %v820
    %v822 = vlaneseq
    %v823 = vshrl.u32 %v822, 7
    %v824 = vsub.s32 0, %v823
    %v825 = vrot.slane %v35, %v824
    %827 = vbcast.lane.b32.xlu0 %v825, 256
    %v828 = vpop.permute.xlu0 %827
    %v829 = vmul.f32 %v27, %v828
    %v830 = vmul.f32 %v28, %v223
    %v831 = vmul.f32 %v29, %v317
    %v832 = vmul.f32 %v30, %v411
    %v833 = vmul.f32 %v31, %v505
    %v834 = vmul.f32 %v32, %v599
    %v835 = vmul.f32 %v33, %v693
    %v836 = vmul.f32 %v34, %v787
    %v837 = vlaneseq
    %v838 = vshrl.u32 %v837, 7
    %v839 = vsub.s32 0, %v838
    %v840 = vrot.slane %v36, %v839
    %842 = vbcast.lane.b32.xlu0 %v840, 256
    %v843 = vpop.permute.xlu0 %842
    %v844 = vlaneseq
    %v845 = vshrl.u32 %v844, 7
    %v846 = vsub.s32 1, %v845
    %v847 = vrot.slane %v36, %v846
    %849 = vbcast.lane.b32.xlu0 %v847, 256
    %v850 = vpop.permute.xlu0 %849
    %v851 = vlaneseq
    %v852 = vshrl.u32 %v851, 7
    %v853 = vsub.s32 2, %v852
    %v854 = vrot.slane %v36, %v853
    %856 = vbcast.lane.b32.xlu0 %v854, 256
    %v857 = vpop.permute.xlu0 %856
    %v858 = vlaneseq
    %v859 = vshrl.u32 %v858, 7
    %v860 = vsub.s32 3, %v859
    %v861 = vrot.slane %v36, %v860
    %863 = vbcast.lane.b32.xlu0 %v861, 256
    %v864 = vpop.permute.xlu0 %863
    %v865 = vlaneseq
    %v866 = vshrl.u32 %v865, 7
    %v867 = vsub.s32 4, %v866
    %v868 = vrot.slane %v36, %v867
    %870 = vbcast.lane.b32.xlu0 %v868, 256
    %v871 = vpop.permute.xlu0 %870
    %v872 = vlaneseq
    %v873 = vshrl.u32 %v872, 7
    %v874 = vsub.s32 5, %v873
    %v875 = vrot.slane %v36, %v874
    %877 = vbcast.lane.b32.xlu0 %v875, 256
    %v878 = vpop.permute.xlu0 %877
    %v879 = vlaneseq
    %v880 = vshrl.u32 %v879, 7
    %v881 = vsub.s32 6, %v880
    %v882 = vrot.slane %v36, %v881
    %884 = vbcast.lane.b32.xlu0 %v882, 256
    %v885 = vpop.permute.xlu0 %884
    %v886 = vlaneseq
    %v887 = vshrl.u32 %v886, 7
    %v888 = vsub.s32 7, %v887
    %v889 = vrot.slane %v36, %v888
    %891 = vbcast.lane.b32.xlu0 %v889, 256
    %v892 = vpop.permute.xlu0 %891
    %v893 = vmul.f32 %v796, %v843
    %v894 = vmul.f32 %v796, %v850
    %v895 = vmul.f32 %v796, %v857
    %v896 = vmul.f32 %v796, %v864
    %v897 = vmul.f32 %v796, %v871
    %v898 = vmul.f32 %v796, %v878
    %v899 = vmul.f32 %v796, %v885
    %v900 = vmul.f32 %v796, %v892
    %v901 = vadd.f32 %v829, %v893
    %v902 = vadd.f32 %v830, %v894
    %v903 = vadd.f32 %v831, %v895
    %v904 = vadd.f32 %v832, %v896
    %v905 = vadd.f32 %v833, %v897
    %v906 = vadd.f32 %v834, %v898
    %v907 = vadd.f32 %v835, %v899
    %v908 = vadd.f32 %v836, %v900
    %v909 = vmul.f32 %v115, %v901
    %v910 = vmul.f32 %v116, %v902
    %v911 = vmul.f32 %v117, %v903
    %v912 = vmul.f32 %v118, %v904
    %v913 = vmul.f32 %v119, %v905
    %v914 = vmul.f32 %v120, %v906
    %v915 = vmul.f32 %v121, %v907
    %v916 = vmul.f32 %v122, %v908
    %v917 = vsel %vm132, %v909, 0.0
    %v918 = vsel %vm132, %v910, 0.0
    %v919 = vadd.f32 %v917, %v918
    %v920 = vsel %vm132, %v911, 0.0
    %v921 = vadd.f32 %v919, %v920
    %v922 = vsel %vm132, %v912, 0.0
    %v923 = vadd.f32 %v921, %v922
    %v924 = vsel %vm132, %v913, 0.0
    %v925 = vadd.f32 %v923, %v924
    %v926 = vsel %vm132, %v914, 0.0
    %v927 = vadd.f32 %v925, %v926
    %v928 = vsel %vm132, %v915, 0.0
    %v929 = vadd.f32 %v927, %v928
    %v930 = vsel %vm132, %v916, 0.0
    %v931 = vadd.f32 %v929, %v930
    %932 = vadd.xlane.f32.xlu0 %v931
    %v933 = vpop.xlane.xlu0 %932
    %v934 = vrot.slane %v933, 4
    %v935 = vadd.f32 %v933, %v934
    %v936 = vrot.slane %v935, 2
    %v937 = vadd.f32 %v935, %v936
    %v938 = vrot.slane %v937, 1
    %v939 = vadd.f32 %v937, %v938
    %s940 = vtos %v939
    %v941 = vmul.f32 %v116, %v223
    %v942 = vmul.f32 %v117, %v317
    %v943 = vmul.f32 %v118, %v411
    %v944 = vmul.f32 %v119, %v505
    %v945 = vmul.f32 %v120, %v599
    %v946 = vmul.f32 %v121, %v693
    %v947 = vmul.f32 %v122, %v787
    %v955 = vcombine.low %v115, %v116
    %v956 = vcombine.low %v117, %v118
    %v957 = vcombine.low %v119, %v120
    %v958 = vsel %vm139, %v955, 0
    %v960 = vsel %vm139, %v956, 0
    %v962 = vsel %vm139, %v957, 0
    %v964 = vsel %vm139, %v121, 0
    %966 = vmatprep.subr.mxu0 0.0
    %967 = vmatpush1.msra.mxu0 %v37
    %968 = vmatprep.subr.mxu0 0.0
    %969 = vmatpush1.msra.mxu0 0.0
    %970 = vmatprep.subr.mxu0 0.0
    %971 = vmatpush1.msra.mxu0 0.0
    %972 = vmatprep.subr.mxu0 0.0
    %973 = vmatpush1.msra.mxu0 0.0
    %974 = vmatprep.subr.mxu0 0.0
    %975 = vmatpush1.msra.mxu0 0.0
    %976 = vmatprep.subr.mxu0 0.0
    %977 = vmatpush1.msra.mxu0 0.0
    %978 = vmatprep.subr.mxu0 0.0
    %979 = vmatpush1.msra.mxu0 0.0
    %980 = vmatprep.subr.mxu0 0.0
    %981 = vmatpush1.msra.mxu0 0.0
    %982 = vmatprep.subr.mxu0 0.0
    %983 = vmatpush1.msra.mxu0 0.0
    %984 = vmatprep.subr.mxu0 0.0
    %985 = vmatpush1.msra.mxu0 0.0
    %986 = vmatprep.subr.mxu0 0.0
    %987 = vmatpush1.msra.mxu0 0.0
    %988 = vmatprep.subr.mxu0 0.0
    %989 = vmatpush1.msra.mxu0 0.0
    %990 = vmatprep.subr.mxu0 0.0
    %991 = vmatpush1.msra.mxu0 0.0
    %992 = vmatprep.subr.mxu0 0.0
    %993 = vmatpush1.msra.mxu0 0.0
    %994 = vmatprep.subr.mxu0 0.0
    %995 = vmatpush1.msra.mxu0 0.0
    %996 = vmatprep.subr.mxu0 0.0
    %997 = vmatpush1.msra.mxu0 0.0
    %998 = vmatprep.subr.mxu0 0.0
    %999 = vmatpush1.msra.mxu0 0.0
    %1000 = vmatprep.subr.mxu0 0.0
    %1001 = vmatpush1.msra.mxu0 0.0
    %1002 = vmatprep.subr.mxu0 0.0
    %1003 = vmatpush1.msra.mxu0 0.0
    %1004 = vmatprep.subr.mxu0 0.0
    %1005 = vmatpush1.msra.mxu0 0.0
    %1006 = vmatprep.subr.mxu0 0.0
    %1007 = vmatpush1.msra.mxu0 0.0
    %1008 = vmatprep.subr.mxu0 0.0
    %1009 = vmatpush1.msra.mxu0 0.0
    %1010 = vmatprep.subr.mxu0 0.0
    %1011 = vmatpush1.msra.mxu0 0.0
    %1012 = vmatprep.subr.mxu0 0.0
    %1013 = vmatpush1.msra.mxu0 0.0
    %1014 = vmatprep.subr.mxu0 0.0
    %1015 = vmatpush1.msra.mxu0 0.0
    %1016 = vmatprep.subr.mxu0 0.0
    %1017 = vmatpush1.msra.mxu0 0.0
    %1018 = vmatprep.subr.mxu0 0.0
    %1019 = vmatpush1.msra.mxu0 0.0
    %1020 = vmatprep.subr.mxu0 0.0
    %1021 = vmatpush1.msra.mxu0 0.0
    %1022 = vmatprep.subr.mxu0 0.0
    %1023 = vmatpush1.msra.mxu0 0.0
    %1024 = vmatprep.subr.mxu0 0.0
    %1025 = vmatpush1.msra.mxu0 0.0
    %1026 = vmatprep.subr.mxu0 0.0
    %1027 = vmatpush1.msra.mxu0 0.0
    %1028 = vmatprep.subr.mxu0 0.0
    %1029 = vmatpush1.msra.mxu0 0.0
    %1030 = vmatprep.mubr.f32.mxu0 0.0
    %1031 = vmatmul.mubr.f32.gmra.mrb[0].mxu0 %v958
    %v1032 = vpop.f32.mrb[0].mxu0
    %v1033 = vadd.f32 0.0, %v1032
    %v1034 = vpop.f32.mrb[0].mxu0
    %1035 = vmatprep.mubr.f32.mxu0 0.0
    %1036 = vmatmul.mubr.f32.gmra.mrb[0].mxu0 %v960
    %v1037 = vpop.f32.mrb[0].mxu0
    %v1038 = vadd.f32 0.0, %v1037
    %v1039 = vpop.f32.mrb[0].mxu0
    %1040 = vmatprep.mubr.f32.mxu0 0.0
    %1041 = vmatmul.mubr.f32.gmra.mrb[0].mxu0 %v962
    %v1042 = vpop.f32.mrb[0].mxu0
    %v1043 = vadd.f32 0.0, %v1042
    %v1044 = vpop.f32.mrb[0].mxu0
    %1045 = vmatprep.mubr.f32.mxu0 0.0
    %1046 = vmatmul.mubr.f32.gmra.mrb[0].mxu0 %v964
    %v1047 = vpop.f32.mrb[0].mxu0
    %v1048 = vadd.f32 0.0, %v1047
    %v1049 = vpop.f32.mrb[0].mxu0
    %1050 = vdwg.mxu0
    %v1057 = vcombine.low %v941, %v942
    %v1058 = vcombine.low %v943, %v944
    %v1059 = vcombine.low %v945, %v946
    %v1063 = vmul.f32 %v1033, %v1057
    %v1064 = vmul.f32 %v1038, %v1058
    %v1065 = vmul.f32 %v1043, %v1059
    %v1066 = vmul.f32 %v1048, %v947
    %v1067 = vsel %vm139, %v1063, 0.0
    %v1068 = vsel %vm139, %v1064, 0.0
    %v1069 = vadd.f32 %v1067, %v1068
    %v1070 = vsel %vm139, %v1065, 0.0
    %v1071 = vadd.f32 %v1069, %v1070
    %v1072 = vsel %vm132, %v1066, 0.0
    %v1073 = vadd.f32 %v1071, %v1072
    %1074 = vadd.xlane.f32.xlu0 %v1073
    %v1075 = vpop.xlane.xlu0 %1074
    %v1076 = vrot.slane %v1075, 4
    %v1077 = vadd.f32 %v1075, %v1076
    %v1078 = vrot.slane %v1077, 2
    %v1079 = vadd.f32 %v1077, %v1078
    %v1080 = vrot.slane %v1079, 1
    %v1081 = vadd.f32 %v1079, %v1080
    %s1082 = vtos %v1081
    %v1083 = vmul.f32 %v115, %v129
    %v1084 = vsel %vm132, %v1083, 0.0
    %1085 = vadd.xlane.f32.xlu0 %v1084
    %v1086 = vpop.xlane.xlu0 %1085
    %v1087 = vrot.slane %v1086, 4
    %v1088 = vadd.f32 %v1086, %v1087
    %v1089 = vrot.slane %v1088, 2
    %v1090 = vadd.f32 %v1088, %v1089
    %v1091 = vrot.slane %v1090, 1
    %v1092 = vadd.f32 %v1090, %v1091
    %s1093 = vtos %v1092
    %s1094 = sadd.f32 %s940, %s1082
    %s1095 = sadd.f32 %s1094, %s1093
    %s1096 = ssub.f32 %s821, %s1095
    %v1097 = vrcp.pop 4.0
    %s1098 = vtos %v1097
    %s1099 = smul.f32 %s1096, %s1098
    %v1100 = vstv %s1099
    %vm1101 = vcmask 0
    %1102 = vst.msk [vmem:[#allocation2] sm:$0x1] %vm1101, %v1100
    // Predicated region
    $region30: #{tpu_custom_call.1} parent=1 // pred_check
      _
    $region31: #{tpu_custom_call.1} parent=1 // pred_check_branch
      %1104 = sbr.rel (0) target = $region33
    $region32: #{tpu_custom_call.1} parent=1 // pred_region
      %s1106 = ssub.s32 16, 16
      %1107 = vsyncadd [#allocation3], %s1106
      %s1109 = sshll.u32 [#allocation2], 4
      %s1110 = int_to_ptr.vmem [resolvable:$true] %s1109
      %1112 = dma.vmem_to_hbm [thread:$0]  %s1110, 16, %s7, [#allocation3]
    $region33: #{tpu_custom_call.1} parent=1 // pred_fallthru
      _
    // Predicated region
    $region34: #{tpu_custom_call.1} parent=1 // pred_check
      _
    $region35: #{tpu_custom_call.1} parent=1 // pred_check_branch
      %1114 = sbr.rel (0) target = $region37
    $region36: #{tpu_custom_call.1} parent=1 // pred_region
      %1115 = dma.done [#allocation3], 16
    $region37: #{tpu_custom_call.1} parent=1 // pred_fallthru
      _
    %1116 = vsyncpa [#allocation3], 1

</llo_original>
